<compile_context>
chip_gen: v5e
topology: v5e:2x2
jax: 0.10.0
libtpu: 0.0.40
codegen_flags: <defaults>
</compile_context>

<pallas_src>
import functools

import jax
import jax.numpy as jnp
from jax import lax
from jax.experimental import pallas as pl
from jax.experimental.pallas import tpu as pltpu


# ----------------------------- helpers --------------------------------------

def _cdiv(a, b):
    return -(-a // b)


def _round_up(a, m):
    return _cdiv(a, m) * m


def _hole_params(holes_ref, b, h, max_holes):
    base = (b * max_holes + h) * 4
    return (holes_ref[base + 0], holes_ref[base + 1],
            holes_ref[base + 2], holes_ref[base + 3])


# ----------------------------- kernels --------------------------------------

def _occlusion_kernel_2d(holes_ref, x_ref, o_ref, *, max_holes, th):
    # holes_ref: SMEM int32[B*max_holes*4]; x_ref/o_ref: VMEM (1, C, TH, W).
    b = pl.program_id(0)
    t = pl.program_id(1)
    TH, W = x_ref.shape[-2], x_ref.shape[-1]
    row = t * th + lax.broadcasted_iota(jnp.int32, (TH, 1), 0)   # global rows
    col = lax.broadcasted_iota(jnp.int32, (1, W), 1)
    keep = jnp.ones((TH, W), dtype=jnp.bool_)
    for h in range(max_holes):                # static unroll (max_holes tiny)
        top, left, hh, hw = _hole_params(holes_ref, b, h, max_holes)
        row_out = (row < top) | (row >= top + hh)       # (TH, 1) - cheap
        col_out = (col < left) | (col >= left + hw)     # (1, W)  - cheap
        keep = keep & (row_out | col_out)               # 2 full-tile ops/hole
    x = x_ref[...]
    o_ref[...] = jnp.where(keep[None, None, :, :], x, jnp.zeros((), x.dtype))


def _occlusion_kernel_flat(holes_ref, row_ref, col_ref, x_ref, o_ref, *,
                           max_holes):
    # Sublane+lane-dense small-image path.  x_ref/o_ref: (1, R, 128) with
    # R = C*H*W/128; row_ref/col_ref: (R, 128) int32 per-element row/col ids
    # (constant block index -> fetched once, kept resident across grid steps).
    b = pl.program_id(0)
    row = row_ref[...]
    col = col_ref[...]
    keep = jnp.ones(row.shape, dtype=jnp.bool_)
    for h in range(max_holes):
        top, left, hh, hw = _hole_params(holes_ref, b, h, max_holes)
        keep = keep & ((row < top) | (row >= top + hh) |
                       (col < left) | (col >= left + hw))
    x = x_ref[...]
    o_ref[...] = jnp.where(keep[None], x, jnp.zeros((), x.dtype))


# ----------------------------- tiling ----------------------------------------

_FLAT_MAX_IMAGE_BYTES = 512 << 10     # overhead-bound regime; ids add traffic
_VMEM_CAP_BYTES = 48 << 20            # < 64 MiB physical per v7x TensorCore
_VMEM_BUDGET_BYTES = 16 << 20         # 4 double-buffered blocks must fit here


def _pick_th(B, H, C, W, itemsize, target_bytes):
    """Row-tile height for the 2-D path.

    Multiple of the dtype's sublane packing (8/16/32 rows for 4/2/1-byte
    dtypes), sized for ~target_bytes per (C, TH, W) block, capped so the four
    double-buffered (aliased in + out) blocks stay under the VMEM budget, and
    split when B == 1 so at least two parallel grid steps exist (v7x has two
    TensorCores sharded via the parallel grid axes)."""
    sub = max(8, 32 // itemsize)
    bytes_per_row = C * W * itemsize
    th = max(sub, (int(target_bytes) // bytes_per_row) // sub * sub)
    while th > sub and 4 * th * bytes_per_row > _VMEM_BUDGET_BYTES:
        th -= sub
    if th >= H:
        th = H                                    # single full-height tile
    if B == 1 and H > sub and _cdiv(H, th) < 2:
        th2 = _round_up(_cdiv(H, 2), sub)         # force >= 2 row tiles
        if th2 < H:
            th = th2
    return int(th)


# ----------------------------- wrapper ----------------------------------------

def random_occlusion(x, key, max_holes=3, max_hole_size=(30, 30),
                     target_block_bytes=2 << 20):
    """Functional equivalent of RandomOcclusionGPU.forward.

    Returns a new array with `max_holes` random rectangles zeroed per image
    (all channels).  For a true in-place update (no defensive HBM copy of x),
    call it under jax.jit(..., donate_argnums=(0,)) and do not reuse x.
    """
    B, C, H, W = x.shape
    kw, kh, kt, kl = jax.random.split(key, 4)

    # random.randint(a, b) in the reference is inclusive on both ends;
    # max_hole_size[0] bounds the width, [1] the height (matches the module).
    max_w = min(max_hole_size[0], W)
    max_h = min(max_hole_size[1], H)
    hole_w = jax.random.randint(kw, (B, max_holes), 1, max_w + 1, dtype=jnp.int32)
    hole_h = jax.random.randint(kh, (B, max_holes), 1, max_h + 1, dtype=jnp.int32)
    top = jax.random.randint(kt, (B, max_holes), 0, H - hole_h + 1, dtype=jnp.int32)
    left = jax.random.randint(kl, (B, max_holes), 0, W - hole_w + 1, dtype=jnp.int32)
    holes = jnp.stack([top, left, hole_h, hole_w], axis=-1).reshape(-1)
    holes = holes.astype(jnp.int32)               # SMEM scalar-prefetch table

    itemsize = jnp.dtype(x.dtype).itemsize
    img_bytes = C * H * W * itemsize
    use_flat = (W % 128 != 0                      # 2-D path already lane dense
                and (C * H * W) % 128 == 0        # flattens to (R, 128) cleanly
                and img_bytes <= _FLAT_MAX_IMAGE_BYTES)

    if use_flat:
        # Sublane+lane-dense path: flatten each image to (R, 128) so stores
        # are full unmasked vst's and every vreg is fully populated.  The
        # int32 id tables are small (image <= 512 KiB) and fetched once.
        R = (C * H * W) // 128
        lin = jnp.arange(C * H * W, dtype=jnp.int32)
        pix = lin % (H * W)
        row_ids = (pix // W).reshape(R, 128)
        col_ids = (pix % W).reshape(R, 128)
        x_flat = x.reshape(B, R, 128)

        kernel = functools.partial(_occlusion_kernel_flat, max_holes=max_holes)
        out = pl.pallas_call(
            kernel,
            out_shape=jax.ShapeDtypeStruct((B, R, 128), x.dtype),
            grid_spec=pltpu.PrefetchScalarGridSpec(
                num_scalar_prefetch=1,
                grid=(B,),
                in_specs=[
                    pl.BlockSpec((R, 128), lambda b, holes: (0, 0)),
                    pl.BlockSpec((R, 128), lambda b, holes: (0, 0)),
                    pl.BlockSpec((1, R, 128), lambda b, holes: (b, 0, 0)),
                ],
                out_specs=pl.BlockSpec((1, R, 128), lambda b, holes: (b, 0, 0)),
            ),
            # operands: holes, row_ids, col_ids, x_flat -> x is input 3.
            input_output_aliases={3: 0},
            compiler_params=pltpu.CompilerParams(
                dimension_semantics=("parallel",),
                vmem_limit_bytes=16 << 20),
        )(holes, row_ids, col_ids, x_flat)
        return out.reshape(B, C, H, W)

    # General path: stream the image in (1, C, TH, W) blocks; ragged last row
    # tile handled by Pallas (OOB rows are never written back).
    th = _pick_th(B, H, C, W, itemsize, target_block_bytes)
    block_bytes = C * th * W * itemsize
    # 4 double-buffered x blocks (aliased in + out) + keep/iota intermediates.
    vmem_limit = int(min(_VMEM_CAP_BYTES,
                         max(16 << 20, 5 * block_bytes + (2 << 20))))

    kernel = functools.partial(_occlusion_kernel_2d, max_holes=max_holes, th=th)
    return pl.pallas_call(
        kernel,
        out_shape=jax.ShapeDtypeStruct(x.shape, x.dtype),
        grid_spec=pltpu.PrefetchScalarGridSpec(
            num_scalar_prefetch=1,
            grid=(B, _cdiv(H, th)),
            in_specs=[pl.BlockSpec((1, C, th, W),
                                   lambda b, t, holes: (b, 0, t, 0))],
            out_specs=pl.BlockSpec((1, C, th, W),
                                   lambda b, t, holes: (b, 0, t, 0)),
        ),
        # operands: holes, x -> x is input 1; alias it onto output 0.
        input_output_aliases={1: 0},
        compiler_params=pltpu.CompilerParams(
            dimension_semantics=("parallel", "parallel"),
            vmem_limit_bytes=vmem_limit),
    )(holes, x)


# ----------------------------- demo / checks ---------------------------------

if __name__ == "__main__":
    import numpy as np

    def check(x_np, out):
        oh = np.asarray(out)
        zeroed = (oh == 0.0) & (x_np != 0.0)
        # Output is either untouched or zeroed, mask identical across
        # channels, and at least one hole landed.
        assert np.all((oh == x_np) | zeroed)
        B, C = x_np.shape[:2]
        for b in range(B):
            for c in range(1, C):
                assert np.array_equal(zeroed[b, 0], zeroed[b, c])
        assert zeroed.any()

    key = jax.random.PRNGKey(0)
    k1, k2, k3, kh1, kh2, kh3 = jax.random.split(key, 6)

    # Donate x so the aliased in-place update is real (no defensive HBM copy).
    occl = jax.jit(random_occlusion, static_argnums=(2, 3, 4),
                   donate_argnums=(0,))

    # 1) Small image, W % 128 != 0 -> sublane+lane-dense flattened path.
    x1 = jax.random.normal(k1, (2, 4, 16, 16), dtype=jnp.float32)
    x1_np = np.asarray(x1)                       # snapshot before donation
    o1 = jax.block_until_ready(occl(x1, kh1, 3, (8, 8), 2 << 20))
    check(x1_np, o1)

    # 2) Wide image, B = 1 -> 2-D path; TH split so >= 2 parallel grid steps.
    x2 = jax.random.normal(k2, (1, 3, 16, 256), dtype=jnp.float32)
    x2_np = np.asarray(x2)
    o2 = jax.block_until_ready(occl(x2, kh2, 2, (30, 16), 2 << 20))
    check(x2_np, o2)

    # 3) Ragged H (60 rows) + small block target -> multiple row tiles with a
    #    ragged last tile (exercises the cdiv grid / dropped OOB writes).
    x3 = jax.random.normal(k3, (2, 3, 60, 256), dtype=jnp.float32)
    x3_np = np.asarray(x3)
    o3 = jax.block_until_ready(occl(x3, kh3, 3, (20, 20), 64 << 10))
    check(x3_np, o3)

    print("KERNEL_OK")
</pallas_src>

<mosaic_0001>
module attributes {stable_mosaic.version = 11 : i64} {
  func.func @_occlusion_kernel_flat(%arg0: i32, %arg1: memref<24xi32, #tpu.memory_space<smem>>, %arg2: memref<8x128xi32, #tpu.memory_space<vmem>>, %arg3: memref<8x128xi32, #tpu.memory_space<vmem>>, %arg4: memref<1x8x128xf32, #tpu.memory_space<vmem>>, %arg5: memref<1x8x128xf32, #tpu.memory_space<vmem>>) attributes {dimension_semantics = [#tpu.dimension_semantics<parallel>], iteration_bounds = array<i64: 2>, scalar_prefetch = 1 : i64, scratch_operands = 0 : i64, tpu.core_type = #tpu.core_type<tc>, window_params = [{pipeline_mode = #tpu.pipeline_mode<synchronous>, transform_indices = @transform_0, window_bounds = array<i64: 8, 128>}, {pipeline_mode = #tpu.pipeline_mode<synchronous>, transform_indices = @transform_1, window_bounds = array<i64: 8, 128>}, {transform_indices = @transform_2, window_bounds = array<i64: 1, 8, 128>}, {transform_indices = @transform_3, window_bounds = array<i64: 1, 8, 128>}]} {
    %c0 = arith.constant 0 : index
    %c0_0 = arith.constant 0 : index
    %0 = vector.load %arg2[%c0, %c0_0] : memref<8x128xi32, #tpu.memory_space<vmem>>, vector<8x128xi32>
    %c0_1 = arith.constant 0 : index
    %c0_2 = arith.constant 0 : index
    %1 = vector.load %arg3[%c0_1, %c0_2] : memref<8x128xi32, #tpu.memory_space<vmem>>, vector<8x128xi32>
    %true = arith.constant true
    %2 = vector.broadcast %true : i1 to vector<8x128xi1>
    %c3_i32 = arith.constant 3 : i32
    %3 = arith.muli %arg0, %c3_i32 : i32
    %c0_i32 = arith.constant 0 : i32
    %4 = arith.addi %3, %c0_i32 : i32
    %c4_i32 = arith.constant 4 : i32
    %5 = arith.muli %4, %c4_i32 : i32
    %c0_i32_3 = arith.constant 0 : i32
    %6 = arith.addi %5, %c0_i32_3 : i32
    %7 = arith.index_cast %6 : i32 to index
    %8 = memref.load %arg1[%7] : memref<24xi32, #tpu.memory_space<smem>>
    %c1_i32 = arith.constant 1 : i32
    %9 = arith.addi %5, %c1_i32 : i32
    %10 = arith.index_cast %9 : i32 to index
    %11 = memref.load %arg1[%10] : memref<24xi32, #tpu.memory_space<smem>>
    %c2_i32 = arith.constant 2 : i32
    %12 = arith.addi %5, %c2_i32 : i32
    %13 = arith.index_cast %12 : i32 to index
    %14 = memref.load %arg1[%13] : memref<24xi32, #tpu.memory_space<smem>>
    %c3_i32_4 = arith.constant 3 : i32
    %15 = arith.addi %5, %c3_i32_4 : i32
    %16 = arith.index_cast %15 : i32 to index
    %17 = memref.load %arg1[%16] : memref<24xi32, #tpu.memory_space<smem>>
    %18 = vector.broadcast %8 : i32 to vector<8x128xi32>
    %19 = arith.cmpi slt, %0, %18 : vector<8x128xi32>
    %20 = arith.addi %8, %14 : i32
    %21 = vector.broadcast %20 : i32 to vector<8x128xi32>
    %22 = arith.cmpi sge, %0, %21 : vector<8x128xi32>
    %23 = arith.ori %19, %22 : vector<8x128xi1>
    %24 = vector.broadcast %11 : i32 to vector<8x128xi32>
    %25 = arith.cmpi slt, %1, %24 : vector<8x128xi32>
    %26 = arith.ori %23, %25 : vector<8x128xi1>
    %27 = arith.addi %11, %17 : i32
    %28 = vector.broadcast %27 : i32 to vector<8x128xi32>
    %29 = arith.cmpi sge, %1, %28 : vector<8x128xi32>
    %30 = arith.ori %26, %29 : vector<8x128xi1>
    %31 = arith.andi %2, %30 : vector<8x128xi1>
    %c3_i32_5 = arith.constant 3 : i32
    %32 = arith.muli %arg0, %c3_i32_5 : i32
    %c1_i32_6 = arith.constant 1 : i32
    %33 = arith.addi %32, %c1_i32_6 : i32
    %c4_i32_7 = arith.constant 4 : i32
    %34 = arith.muli %33, %c4_i32_7 : i32
    %c0_i32_8 = arith.constant 0 : i32
    %35 = arith.addi %34, %c0_i32_8 : i32
    %36 = arith.index_cast %35 : i32 to index
    %37 = memref.load %arg1[%36] : memref<24xi32, #tpu.memory_space<smem>>
    %c1_i32_9 = arith.constant 1 : i32
    %38 = arith.addi %34, %c1_i32_9 : i32
    %39 = arith.index_cast %38 : i32 to index
    %40 = memref.load %arg1[%39] : memref<24xi32, #tpu.memory_space<smem>>
    %c2_i32_10 = arith.constant 2 : i32
    %41 = arith.addi %34, %c2_i32_10 : i32
    %42 = arith.index_cast %41 : i32 to index
    %43 = memref.load %arg1[%42] : memref<24xi32, #tpu.memory_space<smem>>
    %c3_i32_11 = arith.constant 3 : i32
    %44 = arith.addi %34, %c3_i32_11 : i32
    %45 = arith.index_cast %44 : i32 to index
    %46 = memref.load %arg1[%45] : memref<24xi32, #tpu.memory_space<smem>>
    %47 = vector.broadcast %37 : i32 to vector<8x128xi32>
    %48 = arith.cmpi slt, %0, %47 : vector<8x128xi32>
    %49 = arith.addi %37, %43 : i32
    %50 = vector.broadcast %49 : i32 to vector<8x128xi32>
    %51 = arith.cmpi sge, %0, %50 : vector<8x128xi32>
    %52 = arith.ori %48, %51 : vector<8x128xi1>
    %53 = vector.broadcast %40 : i32 to vector<8x128xi32>
    %54 = arith.cmpi slt, %1, %53 : vector<8x128xi32>
    %55 = arith.ori %52, %54 : vector<8x128xi1>
    %56 = arith.addi %40, %46 : i32
    %57 = vector.broadcast %56 : i32 to vector<8x128xi32>
    %58 = arith.cmpi sge, %1, %57 : vector<8x128xi32>
    %59 = arith.ori %55, %58 : vector<8x128xi1>
    %60 = arith.andi %31, %59 : vector<8x128xi1>
    %c3_i32_12 = arith.constant 3 : i32
    %61 = arith.muli %arg0, %c3_i32_12 : i32
    %c2_i32_13 = arith.constant 2 : i32
    %62 = arith.addi %61, %c2_i32_13 : i32
    %c4_i32_14 = arith.constant 4 : i32
    %63 = arith.muli %62, %c4_i32_14 : i32
    %c0_i32_15 = arith.constant 0 : i32
    %64 = arith.addi %63, %c0_i32_15 : i32
    %65 = arith.index_cast %64 : i32 to index
    %66 = memref.load %arg1[%65] : memref<24xi32, #tpu.memory_space<smem>>
    %c1_i32_16 = arith.constant 1 : i32
    %67 = arith.addi %63, %c1_i32_16 : i32
    %68 = arith.index_cast %67 : i32 to index
    %69 = memref.load %arg1[%68] : memref<24xi32, #tpu.memory_space<smem>>
    %c2_i32_17 = arith.constant 2 : i32
    %70 = arith.addi %63, %c2_i32_17 : i32
    %71 = arith.index_cast %70 : i32 to index
    %72 = memref.load %arg1[%71] : memref<24xi32, #tpu.memory_space<smem>>
    %c3_i32_18 = arith.constant 3 : i32
    %73 = arith.addi %63, %c3_i32_18 : i32
    %74 = arith.index_cast %73 : i32 to index
    %75 = memref.load %arg1[%74] : memref<24xi32, #tpu.memory_space<smem>>
    %76 = vector.broadcast %66 : i32 to vector<8x128xi32>
    %77 = arith.cmpi slt, %0, %76 : vector<8x128xi32>
    %78 = arith.addi %66, %72 : i32
    %79 = vector.broadcast %78 : i32 to vector<8x128xi32>
    %80 = arith.cmpi sge, %0, %79 : vector<8x128xi32>
    %81 = arith.ori %77, %80 : vector<8x128xi1>
    %82 = vector.broadcast %69 : i32 to vector<8x128xi32>
    %83 = arith.cmpi slt, %1, %82 : vector<8x128xi32>
    %84 = arith.ori %81, %83 : vector<8x128xi1>
    %85 = arith.addi %69, %75 : i32
    %86 = vector.broadcast %85 : i32 to vector<8x128xi32>
    %87 = arith.cmpi sge, %1, %86 : vector<8x128xi32>
    %88 = arith.ori %84, %87 : vector<8x128xi1>
    %89 = arith.andi %60, %88 : vector<8x128xi1>
    %c0_19 = arith.constant 0 : index
    %c0_20 = arith.constant 0 : index
    %c0_21 = arith.constant 0 : index
    %90 = vector.load %arg4[%c0_19, %c0_20, %c0_21] : memref<1x8x128xf32, #tpu.memory_space<vmem>>, vector<1x8x128xf32>
    %91 = vector.shape_cast %89 : vector<8x128xi1> to vector<1x8x128xi1>
    %cst = arith.constant 0.000000e+00 : f32
    %92 = vector.broadcast %cst : f32 to vector<1x8x128xf32>
    %93 = arith.select %91, %90, %92 : vector<1x8x128xi1>, vector<1x8x128xf32>
    %c0_22 = arith.constant 0 : index
    %c0_23 = arith.constant 0 : index
    %c0_24 = arith.constant 0 : index
    %94 = vector.load %arg5[%c0_22, %c0_23, %c0_24] : memref<1x8x128xf32, #tpu.memory_space<vmem>>, vector<1x8x128xf32>
    tpu.vector_store %arg5[%c0_22, %c0_23, %c0_24], %93 {strides = array<i32>} : memref<1x8x128xf32, #tpu.memory_space<vmem>>, vector<1x8x128xf32>,
    return
  }
  func.func @transform_0(%arg0: i32, %arg1: memref<24xi32, #tpu.memory_space<smem>>) -> (i32, i32) {
    %c0_i32 = arith.constant 0 : i32
    %c0_i32_0 = arith.constant 0 : i32
    %c0_i32_1 = arith.constant 0 : i32
    return %c0_i32, %c0_i32_0 : i32, i32
  }
  func.func @transform_1(%arg0: i32, %arg1: memref<24xi32, #tpu.memory_space<smem>>) -> (i32, i32) {
    %c0_i32 = arith.constant 0 : i32
    %c0_i32_0 = arith.constant 0 : i32
    %c0_i32_1 = arith.constant 0 : i32
    return %c0_i32, %c0_i32_0 : i32, i32
  }
  func.func @transform_2(%arg0: i32, %arg1: memref<24xi32, #tpu.memory_space<smem>>) -> (i32, i32, i32) {
    %c0_i32 = arith.constant 0 : i32
    %c0_i32_0 = arith.constant 0 : i32
    %c0_i32_1 = arith.constant 0 : i32
    return %arg0, %c0_i32, %c0_i32_0 : i32, i32, i32
  }
  func.func @transform_3(%arg0: i32, %arg1: memref<24xi32, #tpu.memory_space<smem>>) -> (i32, i32, i32) {
    %c0_i32 = arith.constant 0 : i32
    %c0_i32_0 = arith.constant 0 : i32
    %c0_i32_1 = arith.constant 0 : i32
    return %arg0, %c0_i32, %c0_i32_0 : i32, i32, i32
  }
}

</mosaic_0001>

<llo_original>
// kernel: random_occlusion.3
$region0: #{random_occlusion.3}
  #allocation0 [shape = 'u32[]', space=smem, size = 0x4, offset = 0x4, fixed_abs, tag = 'smem constant byte address 0x4 - core index']
  #allocation1 [shape = 'u32[72,128]{1,0:T(1,128)}', space=vmem, size = 0x9000, scoped, tag = 'internal scratch']
  #allocation2 [shape = 's32[1]{0}', space=sflag, size = 0x4, scoped, tag = 'scoped memory for random_occlusion.3']
  #allocation3 [shape = 'u8[512]{0}', space=smem, size = 0x200, scoped, tag = 'prefetched SMEM operand 0']
  %s0 = inlined_call_operand.vmem [shape: s32[24], index: 0, kind: input, shape index: {}]
  %s1 = inlined_call_operand.vmem [shape: s32[8,128], index: 1, kind: input, shape index: {}]
  %s2 = inlined_call_operand.vmem [shape: s32[8,128], index: 2, kind: input, shape index: {}]
  %s3 = inlined_call_operand.vmem [shape: f32[2,8,128], index: 3, kind: input, shape index: {}, may-alias: {3,4}]
  %s4 = inlined_call_operand.vmem [shape: f32[2,8,128], index: 4, kind: output, shape index: {}, may-alias: {3,4}]
  %s5 = sld [smem:[#allocation0]]
  $region45: #{random_occlusion.3} parent=0
    _
  %s7 = ssub.s32 1, %s5
  %s8 = scalar_select 0, %s7, %s5
  %s10 = sshll.u32 %s0, 4
  %s11 = int_to_ptr.vmem [resolvable:$true] %s10
  %13 = dma.vmem_to_smem %s11, 16, [#allocation3], [#allocation2]
  %15 = dma.done [#allocation2], 16
  %16 = sfence
  loop: start=0, step=1, limit=4
  $region2: #{random_occlusion.3} parent=0 // loop_pre_header
    _
  $region3: #{random_occlusion.3} parent=0 // loop_header
    %s18 = sphi 0, %s22
    %p19 = scmp.ge.s32.totalorder %s18, 4
    %s26 = sphi 0, %s26
    %s28 = sphi 0, %s26
    %s29 = sphi 0, %s28
    %s43 = sphi 0, %s29
    %s47 = sphi 0, %s47
    %s49 = sphi 0, %s47
    %s50 = sphi 0, %s49
    %s64 = sphi 0, %s50
    %s70 = sphi 0, %s72
    %s73 = sphi 0, %s70
    %s74 = sphi 0, %s73
    %s90 = sphi 0, %s74
    %s96 = sphi 0, %s98
    %s99 = sphi 0, %s96
    %s100 = sphi 0, %s99
    %s116 = sphi 0, %s100
  $region4: #{random_occlusion.3} parent=0 // loop_header_branch
    %21 = sbr.rel (%p19) target = $region8
  $region5: #{random_occlusion.3} parent=0 // loop_body
    %s23 = ssub.s32 %s18, 1
    %s24 = ssub.s32 %s18, 2
    %s25 = sadd.s32 %s18, 1
    %s27 = sadd.s32 %s26, 1
    %p30 = scmp.eq.s32.totalorder %s18, 1
    %p31 = scmp.ne.s32.totalorder %s26, %s28
    %p32 = scmp.eq.s32.totalorder %s18, 0
    %p33 = por %p31, %p32
    %p34 = scmp.ne.s32.totalorder %s26, %s28
    %p35 = scmp.eq.s32.totalorder %s23, 1
    %p36 = por %p34, %p35
    %p37 = scmp.ne.s32.totalorder %s28, %s29
    %p38 = scmp.eq.s32.totalorder %s23, 0
    %p39 = por %p37, %p38
    %p40 = scmp.ne.s32.totalorder %s28, %s29
    %p41 = scmp.eq.s32.totalorder %s24, 1
    %p42 = por %p40, %p41
    %p44 = scmp.ne.s32.totalorder %s29, %s43
    %p45 = scmp.eq.s32.totalorder %s24, 0
    %p46 = por %p44, %p45
    %s48 = sadd.s32 %s47, 1
    %p51 = scmp.eq.s32.totalorder %s18, 1
    %p52 = scmp.ne.s32.totalorder %s47, %s49
    %p53 = scmp.eq.s32.totalorder %s18, 0
    %p54 = por %p52, %p53
    %p55 = scmp.ne.s32.totalorder %s47, %s49
    %p56 = scmp.eq.s32.totalorder %s23, 1
    %p57 = por %p55, %p56
    %p58 = scmp.ne.s32.totalorder %s49, %s50
    %p59 = scmp.eq.s32.totalorder %s23, 0
    %p60 = por %p58, %p59
    %p61 = scmp.ne.s32.totalorder %s49, %s50
    %p62 = scmp.eq.s32.totalorder %s24, 1
    %p63 = por %p61, %p62
    %p65 = scmp.ne.s32.totalorder %s50, %s64
    %p66 = scmp.eq.s32.totalorder %s24, 0
    %p67 = por %p65, %p66
    %s68 = ssub.s32 %s18, %s25
    %p69 = scmp.eq.s32.totalorder %s68, 0
    %s71 = sadd.s32 %s70, 1
    %s72 = scalar_select %p69, %s70, %s71
    %p75 = pneg %p69
    %p76 = scmp.eq.s32.totalorder %s18, 1
    %p77 = por %p75, %p76
    %p78 = scmp.ne.s32.totalorder %s70, %s73
    %p79 = scmp.eq.s32.totalorder %s18, 0
    %p80 = por %p78, %p79
    %p81 = scmp.ne.s32.totalorder %s70, %s73
    %p82 = scmp.eq.s32.totalorder %s23, 1
    %p83 = por %p81, %p82
    %p84 = scmp.ne.s32.totalorder %s73, %s74
    %p85 = scmp.eq.s32.totalorder %s23, 0
    %p86 = por %p84, %p85
    %p87 = scmp.ne.s32.totalorder %s73, %s74
    %p88 = scmp.eq.s32.totalorder %s24, 1
    %p89 = por %p87, %p88
    %p91 = scmp.ne.s32.totalorder %s74, %s90
    %p92 = scmp.eq.s32.totalorder %s24, 0
    %p93 = por %p91, %p92
    %s94 = ssub.s32 %s18, %s25
    %p95 = scmp.eq.s32.totalorder %s94, 0
    %s97 = sadd.s32 %s96, 1
    %s98 = scalar_select %p95, %s96, %s97
    %p101 = pneg %p95
    %p102 = scmp.eq.s32.totalorder %s18, 1
    %p103 = por %p101, %p102
    %p104 = scmp.ne.s32.totalorder %s96, %s99
    %p105 = scmp.eq.s32.totalorder %s18, 0
    %p106 = por %p104, %p105
    %p107 = scmp.ne.s32.totalorder %s96, %s99
    %p108 = scmp.eq.s32.totalorder %s23, 1
    %p109 = por %p107, %p108
    %p110 = scmp.ne.s32.totalorder %s99, %s100
    %p111 = scmp.eq.s32.totalorder %s23, 0
    %p112 = por %p110, %p111
    %p113 = scmp.ne.s32.totalorder %s99, %s100
    %p114 = scmp.eq.s32.totalorder %s24, 1
    %p115 = por %p113, %p114
    %p117 = scmp.ne.s32.totalorder %s100, %s116
    %p118 = scmp.eq.s32.totalorder %s24, 0
    %p119 = por %p117, %p118
    %p120 = scmp.le.s32.totalorder 1, %s18
    %p121 = scmp.lt.s32.totalorder %s18, 3
    %p122 = pnand %p120, %p121
    %p123 = pneg %p122
    // Predicated region
    $region9: #{random_occlusion.3} parent=5 // pred_check
      _
    $region10: #{random_occlusion.3} parent=5 // pred_check_branch
      %125 = sbr.rel (%p122) target = $region12
    $region11: #{random_occlusion.3} parent=5 // pred_region
      %s126 = ssub.s32 %s18, 1
      // Predicated region
      $region13: #{random_occlusion.3} parent=11 // pred_check
        %p127 = pneg %p39
      $region14: #{random_occlusion.3} parent=11 // pred_check_branch
        %129 = sbr.rel (%p127) target = $region16
      $region15: #{random_occlusion.3} parent=11 // pred_region
        _
      $region16: #{random_occlusion.3} parent=11 // pred_fallthru
        _
      // Predicated region
      $region17: #{random_occlusion.3} parent=11 // pred_check
        %p130 = pneg %p60
      $region18: #{random_occlusion.3} parent=11 // pred_check_branch
        %132 = sbr.rel (%p130) target = $region20
      $region19: #{random_occlusion.3} parent=11 // pred_region
        _
      $region20: #{random_occlusion.3} parent=11 // pred_fallthru
        _
    $region12: #{random_occlusion.3} parent=5 // pred_fallthru
      _
    %p133 = scmp.lt.s32.totalorder %s18, 2
    // Predicated region
    $region21: #{random_occlusion.3} parent=5 // pred_check
      %p134 = pneg %p133
    $region22: #{random_occlusion.3} parent=5 // pred_check_branch
      %136 = sbr.rel (%p134) target = $region24
    $region23: #{random_occlusion.3} parent=5 // pred_region
      // Predicated region
      $region25: #{random_occlusion.3} parent=23 // pred_check
        %p137 = pneg %p80
      $region26: #{random_occlusion.3} parent=23 // pred_check_branch
        %139 = sbr.rel (%p137) target = $region28
      $region27: #{random_occlusion.3} parent=23 // pred_region
        %p140 = scmp.lt.s32.totalorder %s18, 1
        %s141 = scalar_select %p140, %s18, 1
        %s142 = smul.addr %s141, 8
        %s143 = scalar_lea.vmem %s3, %s142
      $region28: #{random_occlusion.3} parent=23 // pred_fallthru
        _
    $region24: #{random_occlusion.3} parent=5 // pred_fallthru
      _
    %p144 = scmp.le.s32.totalorder 1, %s18
    %p145 = scmp.lt.s32.totalorder %s18, 3
    %p146 = pnand %p144, %p145
    %p147 = pneg %p146
    // Predicated region
    $region29: #{random_occlusion.3} parent=5 // pred_check
      _
    $region30: #{random_occlusion.3} parent=5 // pred_check_branch
      %149 = sbr.rel (%p146) target = $region32
    $region31: #{random_occlusion.3} parent=5 // pred_region
      %s150 = ssub.s32 %s18, 1
      %p151 = pneg %p39
      %p152 = pneg %p36
      %p153 = pneg %p60
      %p154 = pneg %p57
      %p155 = scmp.lt.s32.totalorder %s23, 1
      %s156 = scalar_select %p155, %s23, 1
      %s157 = smul.addr %s156, 8
      %s158 = scalar_lea.vmem %s3, %s157
      %p159 = pneg %p86
      %p160 = pneg %p83
      %p161 = pneg %p112
      %p162 = pneg %p109
      %p163 = scmp.lt.s32.totalorder %s23, 1
      %s164 = scalar_select %p163, %s23, 1
      %s165 = smul.addr %s164, 8
      %s166 = scalar_lea.vmem %s4, %s165
      %p167 = scmp.lt.s32.totalorder %s23, 1
      %s168 = scalar_select %p167, %s23, 1
      %s169 = smul.addr %s168, 8
      %s170 = scalar_lea.vmem %s3, %s169
      %p171 = scmp.lt.s32.totalorder %s23, 1
      %s172 = scalar_select %p171, %s23, 1
      %s173 = smul.addr %s172, 8
      %s174 = scalar_lea.vmem %s4, %s173
      %v175 = vld [vmem:[%s1] sm:$0xff]
      %v176 = vld [vmem:[%s2] sm:$0xff]
      %s177 = smul.u32 %s23, 12
      %s178 = sld [smem:[#allocation3 + %s177]]
      %s179 = sadd.s32 %s177, 1
      %s180 = sld [smem:[#allocation3 + %s179]]
      %s181 = sadd.s32 %s177, 2
      %s182 = sld [smem:[#allocation3 + %s181]]
      %s183 = sadd.s32 %s177, 3
      %s184 = sld [smem:[#allocation3 + %s183]]
      %v185 = vstv %s178
      %vm186 = vcmp.lt.s32.totalorder %v175, %v185
      %s187 = sadd.s32 %s178, %s182
      %v188 = vstv %s187
      %vm189 = vcmp.ge.s32.totalorder %v175, %v188
      %vm190 = vmor %vm186, %vm189
      %v191 = vstv %s180
      %vm192 = vcmp.lt.s32.totalorder %v176, %v191
      %vm193 = vmor %vm190, %vm192
      %s194 = sadd.s32 %s180, %s184
      %v195 = vstv %s194
      %vm196 = vcmp.ge.s32.totalorder %v176, %v195
      %vm197 = vmor %vm193, %vm196
      %s198 = smul.u32 %s23, 3
      %s199 = sadd.s32 %s198, 1
      %s200 = smul.u32 %s199, 4
      %s201 = sld [smem:[#allocation3 + %s200]]
      %s202 = sadd.s32 %s200, 1
      %s203 = sld [smem:[#allocation3 + %s202]]
      %s204 = sadd.s32 %s200, 2
      %s205 = sld [smem:[#allocation3 + %s204]]
      %s206 = sadd.s32 %s200, 3
      %s207 = sld [smem:[#allocation3 + %s206]]
      %v208 = vstv %s201
      %vm209 = vcmp.lt.s32.totalorder %v175, %v208
      %s210 = sadd.s32 %s201, %s205
      %v211 = vstv %s210
      %vm212 = vcmp.ge.s32.totalorder %v175, %v211
      %vm213 = vmor %vm209, %vm212
      %v214 = vstv %s203
      %vm215 = vcmp.lt.s32.totalorder %v176, %v214
      %vm216 = vmor %vm213, %vm215
      %s217 = sadd.s32 %s203, %s207
      %v218 = vstv %s217
      %vm219 = vcmp.ge.s32.totalorder %v176, %v218
      %vm220 = vmor %vm216, %vm219
      %vm221 = vmand %vm197, %vm220
      %s222 = sadd.s32 %s198, 2
      %s223 = smul.u32 %s222, 4
      %s224 = sld [smem:[#allocation3 + %s223]]
      %s225 = sadd.s32 %s223, 1
      %s226 = sld [smem:[#allocation3 + %s225]]
      %s227 = sadd.s32 %s223, 2
      %s228 = sld [smem:[#allocation3 + %s227]]
      %s229 = sadd.s32 %s223, 3
      %s230 = sld [smem:[#allocation3 + %s229]]
      %v231 = vstv %s224
      %vm232 = vcmp.lt.s32.totalorder %v175, %v231
      %s233 = sadd.s32 %s224, %s228
      %v234 = vstv %s233
      %vm235 = vcmp.ge.s32.totalorder %v175, %v234
      %vm236 = vmor %vm232, %vm235
      %v237 = vstv %s226
      %vm238 = vcmp.lt.s32.totalorder %v176, %v237
      %vm239 = vmor %vm236, %vm238
      %s240 = sadd.s32 %s226, %s230
      %v241 = vstv %s240
      %vm242 = vcmp.ge.s32.totalorder %v176, %v241
      %vm243 = vmor %vm239, %vm242
      %vm244 = vmand %vm221, %vm243
      %v245 = vld [vmem:[%s170] sm:$0xff]
      %v246 = vsel %vm244, %v245, 0.0
      %247 = vst [vmem:[%s174] sm:$0xff] %v246
      %p248 = scmp.lt.s32.totalorder %s23, 1
      %s249 = scalar_select %p248, %s23, 1
      %s250 = smul.addr %s249, 8
      %s251 = scalar_lea.vmem %s4, %s250
      // Predicated region
      $region33: #{random_occlusion.3} parent=31 // pred_check
        %p252 = pneg %p109
      $region34: #{random_occlusion.3} parent=31 // pred_check_branch
        %254 = sbr.rel (%p252) target = $region36
      $region35: #{random_occlusion.3} parent=31 // pred_region
        _
      $region36: #{random_occlusion.3} parent=31 // pred_fallthru
        _
    $region32: #{random_occlusion.3} parent=5 // pred_fallthru
      _
    %p255 = scmp.le.s32.totalorder 2, %s18
    // Predicated region
    $region37: #{random_occlusion.3} parent=5 // pred_check
      %p256 = pneg %p255
    $region38: #{random_occlusion.3} parent=5 // pred_check_branch
      %258 = sbr.rel (%p256) target = $region40
    $region39: #{random_occlusion.3} parent=5 // pred_region
      %s259 = ssub.s32 %s18, 2
      // Predicated region
      $region41: #{random_occlusion.3} parent=39 // pred_check
        %p260 = pneg %p115
      $region42: #{random_occlusion.3} parent=39 // pred_check_branch
        %262 = sbr.rel (%p260) target = $region44
      $region43: #{random_occlusion.3} parent=39 // pred_region
        %p263 = scmp.lt.s32.totalorder %s24, 1
        %s264 = scalar_select %p263, %s24, 1
        %s265 = smul.addr %s264, 8
        %s266 = scalar_lea.vmem %s4, %s265
      $region44: #{random_occlusion.3} parent=39 // pred_fallthru
        _
    $region40: #{random_occlusion.3} parent=5 // pred_fallthru
      _
  $region6: #{random_occlusion.3} parent=0 // loop_footer
    %s22 = sadd.s32 1, %s18
  $region7: #{random_occlusion.3} parent=0 // loop_footer_branch
    %17 = sbr.rel target = $region3
  $region8: #{random_occlusion.3} parent=0 // loop_exit
    _

</llo_original>
